<compile_context>
chip_gen: v7x
topology: tpu7x:2x2x1
jax: 0.10.0
libtpu: 0.0.40
codegen_flags: <defaults>
</compile_context>

<pallas_src>
import functools

import jax
import jax.numpy as jnp
from jax import lax
from jax.experimental import pallas as pl
from jax.experimental.pallas import tpu as pltpu


# ---------------------------------------------------------------------------
# Kernel math
# ---------------------------------------------------------------------------

def _dh_chain(h, w_hz_t, w_hn_t):
    """GRU-ODE autonomous dh for one (sub, H) f32 sub-tile.

    Weights are bf16 in (in, out) layout (pre-transposed in the wrapper), so
    both dots are canonical (TB,K)x(K,N) MXU matmuls with f32 accumulation.
    """
    hz = jnp.dot(h.astype(jnp.bfloat16), w_hz_t,
                 preferred_element_type=jnp.float32)
    z = jax.nn.sigmoid(hz)                                    # EUP, f32
    hn = jnp.dot((z * h).astype(jnp.bfloat16), w_hn_t,
                 preferred_element_type=jnp.float32)
    n = jnp.tanh(hn)                                          # EUP, f32
    return (1.0 - z) * (n - h)


def gru_ode_step_kernel(h_ref, whz_ref, whn_ref, dh_ref, *, n_split):
    """Single forward step: dh, matching the PyTorch module exactly."""
    w_hz = whz_ref[...]                       # bf16, VMEM-resident
    w_hn = whn_ref[...]
    sub = h_ref.shape[0] // n_split
    # Independent sub-tile chains: the scheduler can overlap the MXU matmuls
    # of one sub-tile with the EUP sigmoid/tanh of the other.
    dhs = [
        _dh_chain(h_ref[pl.ds(s * sub, sub), :].astype(jnp.float32), w_hz, w_hn)
        for s in range(n_split)
    ]
    for s in range(n_split):
        dh_ref[pl.ds(s * sub, sub), :] = dhs[s].astype(dh_ref.dtype)


def gru_ode_euler_kernel(h_ref, whz_ref, whn_ref, out_ref,
                         *, n_steps, delta_t, n_split):
    """Fused explicit-Euler integration: N GRU-ODE steps in one kernel.

    h stays on-chip as the fori_loop carry; bf16 weights are loaded once per
    batch tile and reused across every step.
    """
    w_hz = whz_ref[...]
    w_hn = whn_ref[...]
    sub = h_ref.shape[0] // n_split
    h0 = tuple(h_ref[pl.ds(s * sub, sub), :].astype(jnp.float32)
               for s in range(n_split))

    def body(_, hs):
        # n_split independent chains per step -> MXU/EUP overlap within a step.
        return tuple(h + delta_t * _dh_chain(h, w_hz, w_hn) for h in hs)

    # unroll=2: cross-iteration visibility for the LLO scheduler (epilogue VPU
    # ops of step t co-issue with the first matmul pushes of step t+1).
    h_t = lax.fori_loop(0, n_steps, body, h0, unroll=2)
    for s in range(n_split):
        out_ref[pl.ds(s * sub, sub), :] = h_t[s].astype(out_ref.dtype)


# ---------------------------------------------------------------------------
# Wrapper helpers
# ---------------------------------------------------------------------------

def _round_up(x, m):
    return (x + m - 1) // m * m


def _pad2d(x, rows, cols):
    pr, pc = rows - x.shape[0], cols - x.shape[1]
    if pr or pc:
        x = jnp.pad(x, ((0, pr), (0, pc)))
    return x


def _prepare(h, w_hz, w_hn):
    """Pad to hardware-friendly shapes and prep weights once (amortized).

    Zero padding is exact for this cell: padded h columns stay 0 through
    sigmoid/tanh/(1-z)*(n-h) and through Euler updates; padded batch rows are
    sliced off afterwards.
    """
    batch, hidden = h.shape
    hp = _round_up(hidden, 128)          # lane-dense (unmasked) loads/stores
    bp = _round_up(batch, 8)             # f32 sublane alignment
    h_p = _pad2d(h.astype(jnp.float32), bp, hp)
    # One-time wrapper-side prep: bf16 cast (halves DMA bytes + VMEM residency)
    # and transpose to (in, out) so the kernel contracts on RHS dim 0.
    whz_t = _pad2d(jnp.asarray(w_hz, jnp.bfloat16).T, hp, hp)
    whn_t = _pad2d(jnp.asarray(w_hn, jnp.bfloat16).T, hp, hp)
    return h_p, whz_t, whn_t


def _batch_tile(batch):
    """Largest tile dividing the (padded) batch that leaves >= 2 grid tiles
    when possible, so the 'parallel' axis shards across v7x's 2 TensorCores
    and h/out DMAs pipeline behind compute."""
    candidates = (512, 256, 128, 64, 32, 16, 8)
    divisors = [tb for tb in candidates if batch % tb == 0]
    if not divisors:
        return batch
    for tb in divisors:                   # descending: largest tb with >=2 tiles
        if batch // tb >= 2:
            return tb
    return divisors[-1]                   # tiny batch: single tile


def _grid_spec(batch, hidden, tb):
    return pltpu.PrefetchScalarGridSpec(
        num_scalar_prefetch=0,
        grid=(batch // tb,),
        in_specs=[
            # h tile streams (double-buffered) over the batch grid axis.
            pl.BlockSpec((tb, hidden), lambda i: (i, 0)),
            # Grid-invariant weights: whole-array VMEM residency, DMA'd once,
            # single buffer (no wasted double-buffering of an invariant block).
            pl.BlockSpec(memory_space=pltpu.MemorySpace.VMEM),
            pl.BlockSpec(memory_space=pltpu.MemorySpace.VMEM),
        ],
        out_specs=pl.BlockSpec((tb, hidden), lambda i: (i, 0)),
    )


def _compiler_params(tb, hidden):
    # VMEM budget:
    #   weights: single bf16 copy (whole-array residency)        2 * H^2 * 2
    #   h / out tiles: double-buffered f32                        2 * 2*TB*H*4 each
    #   live f32 step intermediates (hz, z, z*h, hn, n, dh, carry) ~8 * TB*H*4
    need = (2 * hidden * hidden * 2
            + 2 * 2 * tb * hidden * 4          # h tiles (double-buffered)
            + 2 * 2 * tb * hidden * 4          # out tiles (double-buffered)
            + 8 * tb * hidden * 4              # live intermediates
            + (1 << 20))                       # headroom
    # TODO(synk): for hidden >= ~4096 on v7x the bf16 weights alone (2*H^2*2 B)
    # exceed the 64 MiB physical VMEM; tile the contraction dim with an inner
    # emit_pipeline instead of full weight residency.
    kwargs = dict(dimension_semantics=("parallel",))
    # v5e's default scoped-VMEM limit is 16 MiB (v6e/v7x: 32 MiB): raise the
    # limit whenever the budget exceeds the smallest default.
    if need > 16 * 1024 * 1024:
        kwargs["vmem_limit_bytes"] = need
    return pltpu.CompilerParams(**kwargs)


# ---------------------------------------------------------------------------
# Public wrappers
# ---------------------------------------------------------------------------

def gru_ode_autonomous(h, w_hz, w_hn):
    """dh = (1-z)*(n-h) for one step. Weights in PyTorch (out, in) layout."""
    batch, hidden = h.shape
    out_dtype = h.dtype
    h_p, whz_t, whn_t = _prepare(h, w_hz, w_hn)
    bp, hp = h_p.shape
    tb = _batch_tile(bp)
    n_split = 2 if tb % 16 == 0 else 1
    cost = pl.CostEstimate(
        flops=4 * bp * hp * hp,                       # two (B,H)x(H,H) matmuls
        transcendentals=2 * bp * hp,                   # sigmoid + tanh
        bytes_accessed=2 * bp * hp * 4 + 2 * hp * hp * 2,
    )
    out = pl.pallas_call(
        functools.partial(gru_ode_step_kernel, n_split=n_split),
        out_shape=jax.ShapeDtypeStruct((bp, hp), jnp.float32),
        grid_spec=_grid_spec(bp, hp, tb),
        compiler_params=_compiler_params(tb, hp),
        cost_estimate=cost,
    )(h_p, whz_t, whn_t)
    return out[:batch, :hidden].astype(out_dtype)


def gru_ode_autonomous_integrate(h0, w_hz, w_hn, *, n_steps, delta_t):
    """N fused explicit-Euler steps of the autonomous GRU-ODE cell in one call."""
    batch, hidden = h0.shape
    out_dtype = h0.dtype
    h_p, whz_t, whn_t = _prepare(h0, w_hz, w_hn)
    bp, hp = h_p.shape
    tb = _batch_tile(bp)
    n_split = 2 if tb % 16 == 0 else 1
    kernel = functools.partial(gru_ode_euler_kernel,
                               n_steps=n_steps, delta_t=delta_t,
                               n_split=n_split)
    cost = pl.CostEstimate(
        flops=n_steps * 4 * bp * hp * hp,
        transcendentals=n_steps * 2 * bp * hp,
        bytes_accessed=2 * bp * hp * 4 + 2 * hp * hp * 2,
    )
    out = pl.pallas_call(
        kernel,
        out_shape=jax.ShapeDtypeStruct((bp, hp), jnp.float32),
        grid_spec=_grid_spec(bp, hp, tb),
        compiler_params=_compiler_params(tb, hp),
        cost_estimate=cost,
    )(h_p, whz_t, whn_t)
    return out[:batch, :hidden].astype(out_dtype)


# ---------------------------------------------------------------------------
# Pure-JAX references
# ---------------------------------------------------------------------------

def reference_dh(h, w_hz, w_hn):
    z = jax.nn.sigmoid(h @ w_hz.T)
    n = jnp.tanh((z * h) @ w_hn.T)
    return (1.0 - z) * (n - h)


def reference_euler(h, w_hz, w_hn, n_steps, delta_t):
    for _ in range(n_steps):
        h = h + delta_t * reference_dh(h, w_hz, w_hn)
    return h


if __name__ == "__main__":
    hidden = 32   # padded to 128 inside the wrapper for lane-dense layout
    batch = 8

    key = jax.random.PRNGKey(0)
    k_h, k_hz, k_hn = jax.random.split(key, 3)

    # torch.nn.Linear default init: uniform(-1/sqrt(H), 1/sqrt(H)), shape (out, in).
    bound = 1.0 / (hidden ** 0.5)
    w_hz = jax.random.uniform(k_hz, (hidden, hidden), jnp.float32, -bound, bound)
    w_hn = jax.random.uniform(k_hn, (hidden, hidden), jnp.float32, -bound, bound)
    h = jax.random.normal(k_h, (batch, hidden), jnp.float32)

    # Single step (matches the module forward; t is unused by the autonomous cell).
    dh = gru_ode_autonomous(h, w_hz, w_hn)
    jax.block_until_ready(dh)
    dh_ref = reference_dh(h, w_hz, w_hn)
    assert dh.shape == dh_ref.shape
    assert jnp.allclose(dh, dh_ref, atol=2e-2, rtol=2e-2), "single-step mismatch"

    # Fused multi-step Euler integration (the main structural optimization).
    n_steps, delta_t = 16, 0.05
    h_T = gru_ode_autonomous_integrate(h, w_hz, w_hn,
                                       n_steps=n_steps, delta_t=delta_t)
    jax.block_until_ready(h_T)
    h_T_ref = reference_euler(h, w_hz, w_hn, n_steps, delta_t)
    assert jnp.allclose(h_T, h_T_ref, atol=2e-2, rtol=2e-2), "fused-euler mismatch"

    print("KERNEL_OK")
</pallas_src>

<mosaic_0001>
module attributes {stable_mosaic.version = 11 : i64} {
  func.func @gru_ode_step_kernel(%arg0: i32, %arg1: memref<8x128xf32, #tpu.memory_space<vmem>>, %arg2: memref<128x128xbf16, #tpu.memory_space<vmem>>, %arg3: memref<128x128xbf16, #tpu.memory_space<vmem>>, %arg4: memref<8x128xf32, #tpu.memory_space<vmem>>) attributes {dimension_semantics = [#tpu.dimension_semantics<parallel>], iteration_bounds = array<i64: 1>, scalar_prefetch = 0 : i64, scratch_operands = 0 : i64, tpu.core_type = #tpu.core_type<tc>, window_params = [{transform_indices = @transform_0, window_bounds = array<i64: 8, 128>}, {pipeline_mode = #tpu.pipeline_mode<synchronous>, transform_indices = @transform_1, window_bounds = array<i64: 128, 128>}, {pipeline_mode = #tpu.pipeline_mode<synchronous>, transform_indices = @transform_2, window_bounds = array<i64: 128, 128>}, {transform_indices = @transform_3, window_bounds = array<i64: 8, 128>}]} {
    %c0 = arith.constant 0 : index
    %c0_0 = arith.constant 0 : index
    %0 = vector.load %arg2[%c0, %c0_0] : memref<128x128xbf16, #tpu.memory_space<vmem>>, vector<128x128xbf16>
    %c0_1 = arith.constant 0 : index
    %c0_2 = arith.constant 0 : index
    %1 = vector.load %arg3[%c0_1, %c0_2] : memref<128x128xbf16, #tpu.memory_space<vmem>>, vector<128x128xbf16>
    %c0_3 = arith.constant 0 : index
    %c0_4 = arith.constant 0 : index
    %2 = vector.load %arg1[%c0_3, %c0_4] : memref<8x128xf32, #tpu.memory_space<vmem>>, vector<8x128xf32>
    %3 = arith.truncf %2 : vector<8x128xf32> to vector<8x128xbf16>
    %cst = arith.constant dense<0.000000e+00> : vector<8x128xf32>
    %4 = tpu.matmul %3, %0, %cst {dimension_numbers = #tpu.dot_dimension_numbers<[1], [0], [0], [1], [0, 0, 1, 1], [], []>} : vector<8x128xbf16>, vector<128x128xbf16>, vector<8x128xf32> -> vector<8x128xf32>
    %5 = arith.negf %4 : vector<8x128xf32>
    %6 = math.exp %5 : vector<8x128xf32>
    %cst_5 = arith.constant 1.000000e+00 : f32
    %7 = vector.broadcast %cst_5 : f32 to vector<8x128xf32>
    %8 = arith.addf %7, %6 : vector<8x128xf32>
    %9 = arith.divf %7, %8 : vector<8x128xf32>
    %10 = arith.mulf %9, %2 : vector<8x128xf32>
    %11 = arith.truncf %10 : vector<8x128xf32> to vector<8x128xbf16>
    %cst_6 = arith.constant dense<0.000000e+00> : vector<8x128xf32>
    %12 = tpu.matmul %11, %1, %cst_6 {dimension_numbers = #tpu.dot_dimension_numbers<[1], [0], [0], [1], [0, 0, 1, 1], [], []>} : vector<8x128xbf16>, vector<128x128xbf16>, vector<8x128xf32> -> vector<8x128xf32>
    %13 = math.tanh %12 : vector<8x128xf32>
    %cst_7 = arith.constant 1.000000e+00 : f32
    %14 = vector.broadcast %cst_7 : f32 to vector<8x128xf32>
    %15 = arith.subf %14, %9 : vector<8x128xf32>
    %16 = arith.subf %13, %2 : vector<8x128xf32>
    %17 = arith.mulf %15, %16 : vector<8x128xf32>
    %c0_8 = arith.constant 0 : index
    %c0_9 = arith.constant 0 : index
    %18 = vector.load %arg4[%c0_8, %c0_9] : memref<8x128xf32, #tpu.memory_space<vmem>>, vector<8x128xf32>
    tpu.vector_store %arg4[%c0_8, %c0_9], %17 {strides = array<i32>} : memref<8x128xf32, #tpu.memory_space<vmem>>, vector<8x128xf32>,
    return
  }
  func.func @transform_0(%arg0: i32) -> (i32, i32) {
    %c0_i32 = arith.constant 0 : i32
    %c0_i32_0 = arith.constant 0 : i32
    return %arg0, %c0_i32 : i32, i32
  }
  func.func @transform_1(%arg0: i32) -> (i32, i32) {
    %c0_i32 = arith.constant 0 : i32
    %c0_i32_0 = arith.constant 0 : i32
    %c0_i32_1 = arith.constant 0 : i32
    return %c0_i32, %c0_i32_0 : i32, i32
  }
  func.func @transform_2(%arg0: i32) -> (i32, i32) {
    %c0_i32 = arith.constant 0 : i32
    %c0_i32_0 = arith.constant 0 : i32
    %c0_i32_1 = arith.constant 0 : i32
    return %c0_i32, %c0_i32_0 : i32, i32
  }
  func.func @transform_3(%arg0: i32) -> (i32, i32) {
    %c0_i32 = arith.constant 0 : i32
    %c0_i32_0 = arith.constant 0 : i32
    return %arg0, %c0_i32 : i32, i32
  }
}

</mosaic_0001>

<llo_original>
// kernel: tpu_custom_call.1
$region0: #{tpu_custom_call.1}
  #allocation0 [shape = 'u32[]', space=smem, size = 0x4, offset = 0x4, fixed_abs, tag = 'smem constant byte address 0x4 - core index']
  #allocation1 [shape = 'u32[144,128]{1,0:T(1,128)}', space=vmem, size = 0x12000, scoped, tag = 'internal scratch']
  %s0 = inlined_call_operand.hbm [shape: f32[8,128], index: 0, kind: input, shape index: {}]
  %s1 = inlined_call_operand.hbm [shape: bf16[128,128], index: 1, kind: input, shape index: {}]
  %s2 = inlined_call_operand.hbm [shape: bf16[128,128], index: 2, kind: input, shape index: {}]
  %s3 = inlined_call_operand.hbm [shape: f32[8,128], index: 3, kind: output, shape index: {}]
  %s4 = sld [smem:[#allocation0]]
  $region34: #{tpu_custom_call.1} parent=0
    _
  %s6 = ssub.s32 1, %s4
  %s7 = scalar_select 0, %s6, %s4
  $region1: #{tpu_custom_call.1} parent=0
    #allocation2 [shape = 'u8[4096]{0}', space=vmem, size = 0x1000, scoped, tag = 'input window, operand 0, single buffered']
    #allocation3 [shape = 's32[1]{0}', space=sflag, size = 0x4, scoped, tag = 'scoped memory for tpu_custom_call.1']
    #allocation4 [shape = 's32[1]{0}', space=sflag, size = 0x4, scoped, tag = 'scoped memory for tpu_custom_call.1']
    #allocation5 [shape = 'u8[32768]{0}', space=vmem, size = 0x8000, scoped, tag = 'input window, operand 1, single buffered']
    #allocation6 [shape = 's32[1]{0}', space=sflag, size = 0x4, scoped, tag = 'scoped memory for tpu_custom_call.1']
    #allocation7 [shape = 'u8[32768]{0}', space=vmem, size = 0x8000, scoped, tag = 'input window, operand 2, single buffered']
    #allocation8 [shape = 'u8[4096]{0}', space=vmem, size = 0x1000, scoped, tag = 'output window, operand 0, single buffered']
    %8 = vsyncpa [#allocation3], 0
    %9 = vsyncpa [#allocation6], 0
    %10 = vsyncpa [#allocation4], 0
    // Predicated region
    $region2: #{tpu_custom_call.1} parent=1 // pred_check
      _
    $region3: #{tpu_custom_call.1} parent=1 // pred_check_branch
      %12 = sbr.rel (0) target = $region5
    $region4: #{tpu_custom_call.1} parent=1 // pred_region
      %s14 = ssub.s32 128, 128
      %15 = vsyncadd [#allocation3], %s14
      %s17 = sshll.u32 [#allocation2], 4
      %s18 = int_to_ptr.vmem [resolvable:$true] %s17
      %20 = dma.hbm_to_vmem [thread:$0]  %s0, 128, %s18, [#allocation3]
    $region5: #{tpu_custom_call.1} parent=1 // pred_fallthru
      _
    // Predicated region
    $region6: #{tpu_custom_call.1} parent=1 // pred_check
      _
    $region7: #{tpu_custom_call.1} parent=1 // pred_check_branch
      %22 = sbr.rel (0) target = $region9
    $region8: #{tpu_custom_call.1} parent=1 // pred_region
      %s24 = ssub.s32 1024, 1024
      %25 = vsyncadd [#allocation6], %s24
      %s26 = sshll.u32 [#allocation5], 4
      %s27 = int_to_ptr.vmem [resolvable:$true] %s26
      %32 = dma.hbm_to_vmem [thread:$0]  %s1, 1024, %s27, [#allocation6], 64, 64, 4
    $region9: #{tpu_custom_call.1} parent=1 // pred_fallthru
      _
    // Predicated region
    $region10: #{tpu_custom_call.1} parent=1 // pred_check
      _
    $region11: #{tpu_custom_call.1} parent=1 // pred_check_branch
      %34 = sbr.rel (0) target = $region13
    $region12: #{tpu_custom_call.1} parent=1 // pred_region
      %s36 = ssub.s32 1024, 1024
      %37 = vsyncadd [#allocation6], %s36
      %s38 = sshll.u32 [#allocation7], 4
      %s39 = int_to_ptr.vmem [resolvable:$true] %s38
      %44 = dma.hbm_to_vmem [thread:$0]  %s2, 1024, %s39, [#allocation6], 64, 64, 4
    $region13: #{tpu_custom_call.1} parent=1 // pred_fallthru
      _
    // Predicated region
    $region14: #{tpu_custom_call.1} parent=1 // pred_check
      _
    $region15: #{tpu_custom_call.1} parent=1 // pred_check_branch
      %46 = sbr.rel (0) target = $region17
    $region16: #{tpu_custom_call.1} parent=1 // pred_region
      %47 = dma.done [#allocation3], 128
    $region17: #{tpu_custom_call.1} parent=1 // pred_fallthru
      _
    // Predicated region
    $region18: #{tpu_custom_call.1} parent=1 // pred_check
      _
    $region19: #{tpu_custom_call.1} parent=1 // pred_check_branch
      %49 = sbr.rel (0) target = $region21
    $region20: #{tpu_custom_call.1} parent=1 // pred_region
      %50 = dma.done [#allocation6], 1024
    $region21: #{tpu_custom_call.1} parent=1 // pred_fallthru
      _
    // Predicated region
    $region22: #{tpu_custom_call.1} parent=1 // pred_check
      _
    $region23: #{tpu_custom_call.1} parent=1 // pred_check_branch
      %52 = sbr.rel (0) target = $region25
    $region24: #{tpu_custom_call.1} parent=1 // pred_region
      %53 = dma.done [#allocation6], 1024
    $region25: #{tpu_custom_call.1} parent=1 // pred_fallthru
      _
    %v55 = vld [vmem:[#allocation5] sm:$0xf]
    %v56 = vld [vmem:[#allocation5 + $0x4] sm:$0xf]
    %v57 = vld [vmem:[#allocation5 + $0x8] sm:$0xf]
    %v58 = vld [vmem:[#allocation5 + $0xc] sm:$0xf]
    %v59 = vld [vmem:[#allocation5 + $0x10] sm:$0xf]
    %v60 = vld [vmem:[#allocation5 + $0x14] sm:$0xf]
    %v61 = vld [vmem:[#allocation5 + $0x18] sm:$0xf]
    %v62 = vld [vmem:[#allocation5 + $0x1c] sm:$0xf]
    %v63 = vld [vmem:[#allocation5 + $0x20] sm:$0xf]
    %v64 = vld [vmem:[#allocation5 + $0x24] sm:$0xf]
    %v65 = vld [vmem:[#allocation5 + $0x28] sm:$0xf]
    %v66 = vld [vmem:[#allocation5 + $0x2c] sm:$0xf]
    %v67 = vld [vmem:[#allocation5 + $0x30] sm:$0xf]
    %v68 = vld [vmem:[#allocation5 + $0x34] sm:$0xf]
    %v69 = vld [vmem:[#allocation5 + $0x38] sm:$0xf]
    %v70 = vld [vmem:[#allocation5 + $0x3c] sm:$0xf]
    %v71 = vld [vmem:[#allocation7] sm:$0xf]
    %v72 = vld [vmem:[#allocation7 + $0x4] sm:$0xf]
    %v73 = vld [vmem:[#allocation7 + $0x8] sm:$0xf]
    %v74 = vld [vmem:[#allocation7 + $0xc] sm:$0xf]
    %v75 = vld [vmem:[#allocation7 + $0x10] sm:$0xf]
    %v76 = vld [vmem:[#allocation7 + $0x14] sm:$0xf]
    %v77 = vld [vmem:[#allocation7 + $0x18] sm:$0xf]
    %v78 = vld [vmem:[#allocation7 + $0x1c] sm:$0xf]
    %v79 = vld [vmem:[#allocation7 + $0x20] sm:$0xf]
    %v80 = vld [vmem:[#allocation7 + $0x24] sm:$0xf]
    %v81 = vld [vmem:[#allocation7 + $0x28] sm:$0xf]
    %v82 = vld [vmem:[#allocation7 + $0x2c] sm:$0xf]
    %v83 = vld [vmem:[#allocation7 + $0x30] sm:$0xf]
    %v84 = vld [vmem:[#allocation7 + $0x34] sm:$0xf]
    %v85 = vld [vmem:[#allocation7 + $0x38] sm:$0xf]
    %v86 = vld [vmem:[#allocation7 + $0x3c] sm:$0xf]
    %v87 = vld [vmem:[#allocation2] sm:$0xff]
    %v88 = vpack.c.bf16 %v87, %v87
    %v105 = vunpack.c.l.b16 %v55
    %v106 = vunpack.c.l.b16 %v56
    %v107 = vunpack.c.l.b16 %v57
    %v108 = vunpack.c.l.b16 %v58
    %v109 = vunpack.c.l.b16 %v59
    %v110 = vunpack.c.l.b16 %v60
    %v111 = vunpack.c.l.b16 %v61
    %v112 = vunpack.c.l.b16 %v62
    %v113 = vunpack.c.l.b16 %v63
    %v114 = vunpack.c.l.b16 %v64
    %v115 = vunpack.c.l.b16 %v65
    %v116 = vunpack.c.l.b16 %v66
    %v117 = vunpack.c.l.b16 %v67
    %v118 = vunpack.c.l.b16 %v68
    %v119 = vunpack.c.l.b16 %v69
    %v120 = vunpack.c.l.b16 %v70
    %v121 = vpack.c.b16 %v106, %v105
    %v122 = vpack.c.b16 %v108, %v107
    %v123 = vpack.c.b16 %v110, %v109
    %v124 = vpack.c.b16 %v112, %v111
    %v125 = vpack.c.b16 %v114, %v113
    %v126 = vpack.c.b16 %v116, %v115
    %v127 = vpack.c.b16 %v118, %v117
    %v128 = vpack.c.b16 %v120, %v119
    %137 = vmatprep.subr.bf16.mxu0 0
    %138 = vmatpush1.bf16.msra.mxu0 %v121
    %139 = vmatprep.subr.bf16.mxu0 0
    %140 = vmatpush1.bf16.msra.mxu0 %v122
    %141 = vmatprep.subr.bf16.mxu0 0
    %142 = vmatpush1.bf16.msra.mxu0 %v123
    %143 = vmatprep.subr.bf16.mxu0 0
    %144 = vmatpush1.bf16.msra.mxu0 %v124
    %145 = vmatprep.subr.bf16.mxu0 0
    %146 = vmatpush1.bf16.msra.mxu0 %v125
    %147 = vmatprep.subr.bf16.mxu0 0
    %148 = vmatpush1.bf16.msra.mxu0 %v126
    %149 = vmatprep.subr.bf16.mxu0 0
    %150 = vmatpush1.bf16.msra.mxu0 %v127
    %151 = vmatprep.subr.bf16.mxu0 0
    %152 = vmatpush1.bf16.msra.mxu0 %v128
    %153 = vmatprep.subr.bf16.mxu0 0
    %154 = vmatpush1.bf16.msra.mxu0 0
    %155 = vmatprep.subr.bf16.mxu0 0
    %156 = vmatpush1.bf16.msra.mxu0 0
    %157 = vmatprep.subr.bf16.mxu0 0
    %158 = vmatpush1.bf16.msra.mxu0 0
    %159 = vmatprep.subr.bf16.mxu0 0
    %160 = vmatpush1.bf16.msra.mxu0 0
    %161 = vmatprep.subr.bf16.mxu0 0
    %162 = vmatpush1.bf16.msra.mxu0 0
    %163 = vmatprep.subr.bf16.mxu0 0
    %164 = vmatpush1.bf16.msra.mxu0 0
    %165 = vmatprep.subr.bf16.mxu0 0
    %166 = vmatpush1.bf16.msra.mxu0 0
    %167 = vmatprep.subr.bf16.mxu0 0
    %168 = vmatpush1.bf16.msra.mxu0 0
    %169 = vmatprep.mubr.bf16.mxu0 0
    %170 = vmatmul.mubr.bf16.gmra.mrb[0].mxu0 %v88
    %v171 = vpop.f32.mrb[0].mxu0
    %v172 = vadd.f32 0.0, %v171
    %v173 = vpop.f32.mrb[0].mxu0
    %v174 = vpop.f32.mrb[0].mxu0
    %v175 = vpop.f32.mrb[0].mxu0
    %176 = vdwg.mxu0
    %v177 = vxor.u32 %v172, 2147483648
    %v178 = vmul.f32 %v177, 1.442695
    %v179 = vpow.pop %v178
    %v180 = vadd.f32 %v179, 1.0
    %v181 = vrcp.pop %v180
    %v182 = vmul.f32 1.0, %v181
    %v183 = vmul.f32 %v182, %v87
    %v184 = vpack.c.bf16 %v183, %v183
    %v201 = vunpack.c.l.b16 %v71
    %v202 = vunpack.c.l.b16 %v72
    %v203 = vunpack.c.l.b16 %v73
    %v204 = vunpack.c.l.b16 %v74
    %v205 = vunpack.c.l.b16 %v75
    %v206 = vunpack.c.l.b16 %v76
    %v207 = vunpack.c.l.b16 %v77
    %v208 = vunpack.c.l.b16 %v78
    %v209 = vunpack.c.l.b16 %v79
    %v210 = vunpack.c.l.b16 %v80
    %v211 = vunpack.c.l.b16 %v81
    %v212 = vunpack.c.l.b16 %v82
    %v213 = vunpack.c.l.b16 %v83
    %v214 = vunpack.c.l.b16 %v84
    %v215 = vunpack.c.l.b16 %v85
    %v216 = vunpack.c.l.b16 %v86
    %v217 = vpack.c.b16 %v202, %v201
    %v218 = vpack.c.b16 %v204, %v203
    %v219 = vpack.c.b16 %v206, %v205
    %v220 = vpack.c.b16 %v208, %v207
    %v221 = vpack.c.b16 %v210, %v209
    %v222 = vpack.c.b16 %v212, %v211
    %v223 = vpack.c.b16 %v214, %v213
    %v224 = vpack.c.b16 %v216, %v215
    %233 = vmatprep.subr.bf16.mxu0 0
    %234 = vmatpush1.bf16.msra.mxu0 %v217
    %235 = vmatprep.subr.bf16.mxu0 0
    %236 = vmatpush1.bf16.msra.mxu0 %v218
    %237 = vmatprep.subr.bf16.mxu0 0
    %238 = vmatpush1.bf16.msra.mxu0 %v219
    %239 = vmatprep.subr.bf16.mxu0 0
    %240 = vmatpush1.bf16.msra.mxu0 %v220
    %241 = vmatprep.subr.bf16.mxu0 0
    %242 = vmatpush1.bf16.msra.mxu0 %v221
    %243 = vmatprep.subr.bf16.mxu0 0
    %244 = vmatpush1.bf16.msra.mxu0 %v222
    %245 = vmatprep.subr.bf16.mxu0 0
    %246 = vmatpush1.bf16.msra.mxu0 %v223
    %247 = vmatprep.subr.bf16.mxu0 0
    %248 = vmatpush1.bf16.msra.mxu0 %v224
    %249 = vmatprep.subr.bf16.mxu0 0
    %250 = vmatpush1.bf16.msra.mxu0 0
    %251 = vmatprep.subr.bf16.mxu0 0
    %252 = vmatpush1.bf16.msra.mxu0 0
    %253 = vmatprep.subr.bf16.mxu0 0
    %254 = vmatpush1.bf16.msra.mxu0 0
    %255 = vmatprep.subr.bf16.mxu0 0
    %256 = vmatpush1.bf16.msra.mxu0 0
    %257 = vmatprep.subr.bf16.mxu0 0
    %258 = vmatpush1.bf16.msra.mxu0 0
    %259 = vmatprep.subr.bf16.mxu0 0
    %260 = vmatpush1.bf16.msra.mxu0 0
    %261 = vmatprep.subr.bf16.mxu0 0
    %262 = vmatpush1.bf16.msra.mxu0 0
    %263 = vmatprep.subr.bf16.mxu0 0
    %264 = vmatpush1.bf16.msra.mxu0 0
    %265 = vmatprep.mubr.bf16.mxu0 0
    %266 = vmatmul.mubr.bf16.gmra.mrb[0].mxu0 %v184
    %v267 = vpop.f32.mrb[0].mxu0
    %v268 = vadd.f32 0.0, %v267
    %v269 = vpop.f32.mrb[0].mxu0
    %v270 = vpop.f32.mrb[0].mxu0
    %v271 = vpop.f32.mrb[0].mxu0
    %272 = vdwg.mxu0
    %v273 = vtanh.pop %v268
    %v274 = vsub.f32 1.0, %v182
    %v275 = vsub.f32 %v273, %v87
    %v276 = vmul.f32 %v274, %v275
    %277 = vst [vmem:[#allocation8] sm:$0xff] %v276
    // Predicated region
    $region26: #{tpu_custom_call.1} parent=1 // pred_check
      _
    $region27: #{tpu_custom_call.1} parent=1 // pred_check_branch
      %279 = sbr.rel (0) target = $region29
    $region28: #{tpu_custom_call.1} parent=1 // pred_region
      %s281 = ssub.s32 128, 128
      %282 = vsyncadd [#allocation4], %s281
      %s284 = sshll.u32 [#allocation8], 4
      %s285 = int_to_ptr.vmem [resolvable:$true] %s284
      %287 = dma.vmem_to_hbm [thread:$0]  %s285, 128, %s3, [#allocation4]
    $region29: #{tpu_custom_call.1} parent=1 // pred_fallthru
      _
    // Predicated region
    $region30: #{tpu_custom_call.1} parent=1 // pred_check
      _
    $region31: #{tpu_custom_call.1} parent=1 // pred_check_branch
      %289 = sbr.rel (0) target = $region33
    $region32: #{tpu_custom_call.1} parent=1 // pred_region
      %290 = dma.done [#allocation4], 128
    $region33: #{tpu_custom_call.1} parent=1 // pred_fallthru
      _
    %291 = vsyncpa [#allocation3], 1
    %292 = vsyncpa [#allocation6], 1
    %293 = vsyncpa [#allocation4], 1

</llo_original>
